<compile_context>
chip_gen: v5e
topology: v5e:2x2
jax: 0.10.0
libtpu: 0.0.40
codegen_flags: <defaults>
</compile_context>

<pallas_src>
import jax
import jax.numpy as jnp
from jax.experimental import pallas as pl
from jax.experimental.pallas import tpu as pltpu


def _cdiv(a, b):
    return -(-a // b)


def _round_up(x, m):
    return ((x + m - 1) // m) * m


def _device_info():
    """(physical VMEM bytes per TensorCore, TensorCores per chip) — perf heuristics only."""
    try:
        kind = jax.devices()[0].device_kind.lower()
    except Exception:
        return 64 << 20, 2
    if "v7" in kind:
        return 64 << 20, 2
    if "v4" in kind or "v5p" in kind:
        return 128 << 20, 2
    if "v5" in kind or "v6" in kind:
        return 128 << 20, 1
    return 64 << 20, 2          # unknown chip: conservative (v7x numbers)


def prepare_params(w, b, compute_dtype=jnp.float32):
    """One-time weight prep (amortized across calls): transpose + optional cast.

    w: [out_dim, in_dim] (PyTorch nn.Linear layout), b: [out_dim].
    Returns w_t: [in_dim, out_dim] in compute_dtype, b2: [1, out_dim] f32.
    """
    return w.T.astype(compute_dtype), b.reshape(1, -1).astype(jnp.float32)


def node_update_kernel(h_ref, x_ref, w_ref, b_ref, out_ref):
    # In-register cast of self_h to the matmul dtype: self_h stays f32 in HBM,
    # no extra wrapper cast/pad pass over it.
    x = x_ref[...].astype(w_ref.dtype)
    z = jnp.dot(x, w_ref[...], preferred_element_type=jnp.float32)   # MXU, f32 acc
    z = z + b_ref[...]                                               # (1, f) bias bcast
    out_ref[...] = (h_ref[...].astype(jnp.float32)
                    + jnp.maximum(z, 0.0)).astype(out_ref.dtype)     # ReLU + residual


def node_update(h, self_h, w_t, b2):
    """h: [N, out_dim], self_h: [N, in_dim] (f32), w_t: [in_dim, out_dim], b2: [1, out_dim]."""
    N, out_dim = h.shape
    N2, in_dim = self_h.shape
    assert N2 == N
    assert w_t.shape == (in_dim, out_dim)
    assert b2.shape == (1, out_dim)

    vmem_bytes, num_tc = _device_info()
    budget = int(vmem_bytes * 0.75)           # leave compiler-scratch / spill headroom

    h_item = jnp.dtype(h.dtype).itemsize
    x_item = jnp.dtype(self_h.dtype).itemsize
    w_item = jnp.dtype(w_t.dtype).itemsize

    # ---- feature tiling: keep W^T fully resident unless VMEM forces tiling ----
    w_resident_bytes = 2 * in_dim * out_dim * w_item      # counted double-buffered
    tile_feat = (w_resident_bytes > budget // 2) and (out_dim % 128 == 0)
    if tile_feat:
        tile_f = 512 if out_dim % 512 == 0 else (256 if out_dim % 256 == 0 else 128)
        n_f = out_dim // tile_f
    else:
        tile_f = out_dim    # full-dim block (lane-dense when out_dim % 128 == 0); W fetched once
        n_f = 1

    # ---- row tiling: largest tile that fits the budget, minimal-waste rounding ----
    per_row = (2 * tile_f * h_item       # h tile, double-buffered
               + 2 * in_dim * x_item     # self_h tile (f32)
               + 2 * tile_f * h_item     # out tile
               + 2 * tile_f * 4)         # f32 matmul / ReLU intermediates
    fixed = (2 * in_dim * tile_f * w_item    # W^T tile
             + 2 * tile_f * 4                # bias
             + (2 << 20))                    # internal-scratch headroom
    tile_n_max = max(16, ((budget - fixed) // per_row) // 16 * 16)

    grid_i = _cdiv(N, tile_n_max)
    if num_tc > 1 and N >= 2 * 16:
        # Even number of row tiles so the "parallel" axis feeds both TensorCores.
        grid_i = _round_up(max(grid_i, num_tc), num_tc)
    tile_n = _round_up(_cdiv(N, grid_i), 16)
    if tile_n >= N:
        tile_n = N                           # full-dim block: no row handling needed
    grid_i = _cdiv(N, tile_n)

    footprint = fixed + per_row * tile_n
    vmem_limit = int(min(vmem_bytes * 0.8, max(32 << 20, footprint * 1.25)))

    if not tile_feat:
        grid = (grid_i,)
        in_specs = [
            pl.BlockSpec((tile_n, out_dim), lambda i: (i, 0)),    # h
            pl.BlockSpec((tile_n, in_dim), lambda i: (i, 0)),     # self_h (f32, cast in-kernel)
            pl.BlockSpec((in_dim, out_dim), lambda i: (0, 0)),    # W^T, resident
            pl.BlockSpec((1, out_dim), lambda i: (0, 0)),         # bias
        ]
        out_specs = pl.BlockSpec((tile_n, out_dim), lambda i: (i, 0))
        dim_sem = ("parallel",)
    else:
        # Feature tile OUTER so each W^T tile is fetched once, not once per row tile.
        grid = (n_f, grid_i)
        in_specs = [
            pl.BlockSpec((tile_n, tile_f), lambda j, i: (i, j)),
            pl.BlockSpec((tile_n, in_dim), lambda j, i: (i, 0)),
            pl.BlockSpec((in_dim, tile_f), lambda j, i: (0, j)),
            pl.BlockSpec((1, tile_f), lambda j, i: (0, j)),
        ]
        out_specs = pl.BlockSpec((tile_n, tile_f), lambda j, i: (i, j))
        dim_sem = ("parallel", "parallel")

    return pl.pallas_call(
        node_update_kernel,
        out_shape=jax.ShapeDtypeStruct((N, out_dim), h.dtype),
        grid=grid,
        in_specs=in_specs,
        out_specs=out_specs,
        compiler_params=pltpu.CompilerParams(
            dimension_semantics=dim_sem,
            vmem_limit_bytes=vmem_limit),
    )(h, self_h, w_t, b2)


def node_update_ref(h, self_h, w, b):
    """Pure-JAX reference of the PyTorch forward: h + relu(self_h @ W.T + b)."""
    z = jnp.dot(self_h, w.T, preferred_element_type=jnp.float32) + b
    return h + jnp.maximum(z, 0.0)


if __name__ == "__main__":
    # Small shapes consistent with the module: N nodes, in_dim -> out_dim Linear.
    N, in_dim, out_dim = 16, 32, 32

    key = jax.random.PRNGKey(0)
    k_h, k_sh, k_w, k_b = jax.random.split(key, 4)

    h = jax.random.normal(k_h, (N, out_dim), dtype=jnp.float32)
    self_h = jax.random.normal(k_sh, (N, in_dim), dtype=jnp.float32)

    # nn.Linear(in_dim, out_dim): W [out_dim, in_dim], b [out_dim].
    bound = 1.0 / (in_dim ** 0.5)
    w = jax.random.uniform(k_w, (out_dim, in_dim), minval=-bound, maxval=bound,
                           dtype=jnp.float32)
    b = jax.random.uniform(k_b, (out_dim,), minval=-bound, maxval=bound,
                           dtype=jnp.float32)

    # Weight prep hoisted out of the per-call path. Default f32 matches PyTorch
    # exactly; pass compute_dtype=jnp.bfloat16 if that precision is signed off.
    w_t, b2 = prepare_params(w, b, compute_dtype=jnp.float32)

    out = jax.block_until_ready(node_update(h, self_h, w_t, b2))
    ref = node_update_ref(h, self_h, w, b)

    assert out.shape == (N, out_dim)
    err = jnp.max(jnp.abs(out - ref))
    assert jnp.allclose(out, ref, atol=1e-3, rtol=1e-3), f"max abs err {err}"

    print("KERNEL_OK")
</pallas_src>

<mosaic_0001>
module attributes {stable_mosaic.version = 11 : i64} {
  func.func @node_update_kernel(%arg0: i32, %arg1: memref<16x32xf32, #tpu.memory_space<vmem>>, %arg2: memref<16x32xf32, #tpu.memory_space<vmem>>, %arg3: memref<32x32xf32, #tpu.memory_space<vmem>>, %arg4: memref<1x32xf32, #tpu.memory_space<vmem>>, %arg5: memref<16x32xf32, #tpu.memory_space<vmem>>) attributes {dimension_semantics = [#tpu.dimension_semantics<parallel>], iteration_bounds = array<i64: 1>, scalar_prefetch = 0 : i64, scratch_operands = 0 : i64, tpu.core_type = #tpu.core_type<tc>, window_params = [{transform_indices = @transform_0, window_bounds = array<i64: 16, 32>}, {transform_indices = @transform_1, window_bounds = array<i64: 16, 32>}, {pipeline_mode = #tpu.pipeline_mode<synchronous>, transform_indices = @transform_2, window_bounds = array<i64: 32, 32>}, {pipeline_mode = #tpu.pipeline_mode<synchronous>, transform_indices = @transform_3, window_bounds = array<i64: 1, 32>}, {transform_indices = @transform_4, window_bounds = array<i64: 16, 32>}]} {
    %c0 = arith.constant 0 : index
    %c0_0 = arith.constant 0 : index
    %0 = vector.load %arg2[%c0, %c0_0] : memref<16x32xf32, #tpu.memory_space<vmem>>, vector<16x32xf32>
    %c0_1 = arith.constant 0 : index
    %c0_2 = arith.constant 0 : index
    %1 = vector.load %arg3[%c0_1, %c0_2] : memref<32x32xf32, #tpu.memory_space<vmem>>, vector<32x32xf32>
    %cst = arith.constant dense<0.000000e+00> : vector<16x32xf32>
    %2 = tpu.matmul %0, %1, %cst {dimension_numbers = #tpu.dot_dimension_numbers<[1], [0], [0], [1], [0, 0, 1, 1], [], []>} : vector<16x32xf32>, vector<32x32xf32>, vector<16x32xf32> -> vector<16x32xf32>
    %c0_3 = arith.constant 0 : index
    %c0_4 = arith.constant 0 : index
    %3 = vector.load %arg4[%c0_3, %c0_4] : memref<1x32xf32, #tpu.memory_space<vmem>>, vector<1x32xf32>
    %4 = vector.broadcast %3 : vector<1x32xf32> to vector<16x32xf32>
    %5 = arith.addf %2, %4 : vector<16x32xf32>
    %c0_5 = arith.constant 0 : index
    %c0_6 = arith.constant 0 : index
    %6 = vector.load %arg1[%c0_5, %c0_6] : memref<16x32xf32, #tpu.memory_space<vmem>>, vector<16x32xf32>
    %cst_7 = arith.constant 0.000000e+00 : f32
    %7 = vector.broadcast %cst_7 : f32 to vector<16x32xf32>
    %8 = arith.maximumf %5, %7 : vector<16x32xf32>
    %9 = arith.addf %6, %8 : vector<16x32xf32>
    %c0_8 = arith.constant 0 : index
    %c0_9 = arith.constant 0 : index
    %10 = vector.load %arg5[%c0_8, %c0_9] : memref<16x32xf32, #tpu.memory_space<vmem>>, vector<16x32xf32>
    tpu.vector_store %arg5[%c0_8, %c0_9], %9 {strides = array<i32>} : memref<16x32xf32, #tpu.memory_space<vmem>>, vector<16x32xf32>,
    return
  }
  func.func @transform_0(%arg0: i32) -> (i32, i32) {
    %c0_i32 = arith.constant 0 : i32
    %c0_i32_0 = arith.constant 0 : i32
    return %arg0, %c0_i32 : i32, i32
  }
  func.func @transform_1(%arg0: i32) -> (i32, i32) {
    %c0_i32 = arith.constant 0 : i32
    %c0_i32_0 = arith.constant 0 : i32
    return %arg0, %c0_i32 : i32, i32
  }
  func.func @transform_2(%arg0: i32) -> (i32, i32) {
    %c0_i32 = arith.constant 0 : i32
    %c0_i32_0 = arith.constant 0 : i32
    %c0_i32_1 = arith.constant 0 : i32
    return %c0_i32, %c0_i32_0 : i32, i32
  }
  func.func @transform_3(%arg0: i32) -> (i32, i32) {
    %c0_i32 = arith.constant 0 : i32
    %c0_i32_0 = arith.constant 0 : i32
    %c0_i32_1 = arith.constant 0 : i32
    return %c0_i32, %c0_i32_0 : i32, i32
  }
  func.func @transform_4(%arg0: i32) -> (i32, i32) {
    %c0_i32 = arith.constant 0 : i32
    %c0_i32_0 = arith.constant 0 : i32
    return %arg0, %c0_i32 : i32, i32
  }
}

</mosaic_0001>

<llo_original>
// kernel: tpu_custom_call.1
$region0: #{tpu_custom_call.1}
  #allocation0 [shape = 'u32[]', space=smem, size = 0x4, offset = 0x4, fixed_abs, tag = 'smem constant byte address 0x4 - core index']
  #allocation1 [shape = 'u32[72,128]{1,0:T(1,128)}', space=vmem, size = 0x9000, scoped, tag = 'internal scratch']
  %s0 = inlined_call_operand.hbm [shape: f32[16,32], index: 0, kind: input, shape index: {}]
  %s1 = inlined_call_operand.hbm [shape: f32[16,32], index: 1, kind: input, shape index: {}]
  %s2 = inlined_call_operand.hbm [shape: f32[32,32], index: 2, kind: input, shape index: {}]
  %s3 = inlined_call_operand.vmem [shape: f32[1,32], index: 3, kind: input, shape index: {}]
  %s4 = inlined_call_operand.hbm [shape: f32[16,32], index: 4, kind: output, shape index: {}]
  %s5 = sld [smem:[#allocation0]]
  $region38: #{tpu_custom_call.1} parent=0
    _
  %s7 = ssub.s32 1, %s5
  %s8 = scalar_select 0, %s7, %s5
  $region1: #{tpu_custom_call.1} parent=0
    #allocation2 [shape = 'u8[8192]{0}', space=vmem, size = 0x2000, scoped, tag = 'input window, operand 0, single buffered']
    #allocation3 [shape = 's32[1]{0}', space=sflag, size = 0x4, scoped, tag = 'scoped memory for tpu_custom_call.1']
    #allocation4 [shape = 's32[1]{0}', space=sflag, size = 0x4, scoped, tag = 'scoped memory for tpu_custom_call.1']
    #allocation5 [shape = 'u8[8192]{0}', space=vmem, size = 0x2000, scoped, tag = 'input window, operand 1, single buffered']
    #allocation6 [shape = 's32[1]{0}', space=sflag, size = 0x4, scoped, tag = 'scoped memory for tpu_custom_call.1']
    #allocation7 [shape = 'u8[16384]{0}', space=vmem, size = 0x4000, scoped, tag = 'input window, operand 2, single buffered']
    #allocation8 [shape = 'u8[8192]{0}', space=vmem, size = 0x2000, scoped, tag = 'output window, operand 0, single buffered']
    %9 = vsyncpa [#allocation3], 0
    %10 = vsyncpa [#allocation6], 0
    %11 = vsyncpa [#allocation4], 0
    // Predicated region
    $region2: #{tpu_custom_call.1} parent=1 // pred_check
      _
    $region3: #{tpu_custom_call.1} parent=1 // pred_check_branch
      %13 = sbr.rel (0) target = $region5
    $region4: #{tpu_custom_call.1} parent=1 // pred_region
      %15 = vsyncadd [#allocation3], 0
      %s16 = sshll.u32 %s0, 4
      %s17 = int_to_ptr.hbm [resolvable:$true] %s16
      %s18 = sshll.u32 [#allocation2], 4
      %s19 = int_to_ptr.vmem [resolvable:$true] %s18
      %24 = dma.hbm_to_vmem [thread:$0]  %s17, 256, %s19, [#allocation3], 128, 128, 8
    $region5: #{tpu_custom_call.1} parent=1 // pred_fallthru
      _
    // Predicated region
    $region6: #{tpu_custom_call.1} parent=1 // pred_check
      _
    $region7: #{tpu_custom_call.1} parent=1 // pred_check_branch
      %26 = sbr.rel (0) target = $region9
    $region8: #{tpu_custom_call.1} parent=1 // pred_region
      %28 = vsyncadd [#allocation6], 0
      %s29 = sshll.u32 %s1, 4
      %s30 = int_to_ptr.hbm [resolvable:$true] %s29
      %s31 = sshll.u32 [#allocation5], 4
      %s32 = int_to_ptr.vmem [resolvable:$true] %s31
      %37 = dma.hbm_to_vmem [thread:$0]  %s30, 256, %s32, [#allocation6], 128, 128, 8
    $region9: #{tpu_custom_call.1} parent=1 // pred_fallthru
      _
    // Predicated region
    $region10: #{tpu_custom_call.1} parent=1 // pred_check
      _
    $region11: #{tpu_custom_call.1} parent=1 // pred_check_branch
      %39 = sbr.rel (0) target = $region13
    $region12: #{tpu_custom_call.1} parent=1 // pred_region
      %41 = vsyncadd [#allocation6], 0
      %s42 = sshll.u32 %s2, 4
      %s43 = int_to_ptr.hbm [resolvable:$true] %s42
      %s44 = sshll.u32 [#allocation7], 4
      %s45 = int_to_ptr.vmem [resolvable:$true] %s44
      %50 = dma.hbm_to_vmem [thread:$0]  %s43, 512, %s45, [#allocation6], 128, 128, 8
    $region13: #{tpu_custom_call.1} parent=1 // pred_fallthru
      _
    // Predicated region
    $region14: #{tpu_custom_call.1} parent=1 // pred_check
      _
    $region15: #{tpu_custom_call.1} parent=1 // pred_check_branch
      %52 = sbr.rel (0) target = $region17
    $region16: #{tpu_custom_call.1} parent=1 // pred_region
      _
    $region17: #{tpu_custom_call.1} parent=1 // pred_fallthru
      _
    // Predicated region
    $region18: #{tpu_custom_call.1} parent=1 // pred_check
      _
    $region19: #{tpu_custom_call.1} parent=1 // pred_check_branch
      %54 = sbr.rel (0) target = $region21
    $region20: #{tpu_custom_call.1} parent=1 // pred_region
      %56 = dma.done [#allocation3], 256
    $region21: #{tpu_custom_call.1} parent=1 // pred_fallthru
      _
    // Predicated region
    $region22: #{tpu_custom_call.1} parent=1 // pred_check
      _
    $region23: #{tpu_custom_call.1} parent=1 // pred_check_branch
      %58 = sbr.rel (0) target = $region25
    $region24: #{tpu_custom_call.1} parent=1 // pred_region
      %60 = dma.done [#allocation6], 256
    $region25: #{tpu_custom_call.1} parent=1 // pred_fallthru
      _
    // Predicated region
    $region26: #{tpu_custom_call.1} parent=1 // pred_check
      _
    $region27: #{tpu_custom_call.1} parent=1 // pred_check_branch
      %62 = sbr.rel (0) target = $region29
    $region28: #{tpu_custom_call.1} parent=1 // pred_region
      %64 = dma.done [#allocation6], 512
    $region29: #{tpu_custom_call.1} parent=1 // pred_fallthru
      _
    %v65 = vld [vmem:[#allocation5] sm:$0xff]
    %v66 = vld [vmem:[#allocation5 + $0x8] sm:$0xff]
    %v67 = vld [vmem:[#allocation7] sm:$0xff]
    %v68 = vld [vmem:[#allocation7 + $0x8] sm:$0xff]
    %v69 = vld [vmem:[#allocation7 + $0x10] sm:$0xff]
    %v70 = vld [vmem:[#allocation7 + $0x18] sm:$0xff]
    %v71 = vld [vmem:[%s3] sm:$0x1]
    %v73 = vperm.slane %v71, 0
    %vm75 = vcmask 261120
    %v77 = vsel %vm75, %v65, 0
    %v80 = vsel %vm75, %v66, 0
    %82 = vmatpush.msra.mxu0 0.0
    %83 = vmatpush.msra.mxu0 0.0
    %84 = vmatpush.msra.mxu0 0.0
    %85 = vmatpush.msra.mxu0 0.0
    %86 = vmatpush.msra.mxu0 0.0
    %87 = vmatpush.msra.mxu0 0.0
    %88 = vmatpush.msra.mxu0 0.0
    %89 = vmatpush.msra.mxu0 0.0
    %90 = vmatpush.msra.mxu0 0.0
    %91 = vmatpush.msra.mxu0 0.0
    %92 = vmatpush.msra.mxu0 0.0
    %93 = vmatpush.msra.mxu0 0.0
    %94 = vmatpush.msra.mxu0 %v70
    %95 = vmatpush.msra.mxu0 %v69
    %96 = vmatpush.msra.mxu0 %v68
    %97 = vmatpush.msra.mxu0 %v67
    %98 = vmatmul.f32.gmra.mxu0 %v77
    %v99 = vpop.f32.mrf.mxu0
    %v100 = vadd.f32 %v73, %v99
    %101 = vmatmul.f32.gmra.mxu0 %v80
    %v102 = vpop.f32.mrf.mxu0
    %v103 = vadd.f32 %v73, %v102
    %104 = vdwg.mxu0
    %v105 = vld [vmem:[#allocation2] sm:$0xff]
    %v106 = vld [vmem:[#allocation2 + $0x8] sm:$0xff]
    %v107 = vmax.f32 %v100, 0.0
    %v108 = vmax.f32 %v103, 0.0
    %v109 = vadd.f32 %v105, %v107
    %v110 = vadd.f32 %v106, %v108
    %111 = vst.msk [vmem:[#allocation8] sm:$0xff] %vm75, %v109
    %112 = vst.msk [vmem:[#allocation8 + $0x8] sm:$0xff] %vm75, %v110
    // Predicated region
    $region30: #{tpu_custom_call.1} parent=1 // pred_check
      _
    $region31: #{tpu_custom_call.1} parent=1 // pred_check_branch
      %114 = sbr.rel (0) target = $region33
    $region32: #{tpu_custom_call.1} parent=1 // pred_region
      %116 = vsyncadd [#allocation4], 0
      %s117 = sshll.u32 [#allocation8], 4
      %s118 = int_to_ptr.vmem [resolvable:$true] %s117
      %s119 = sshll.u32 %s4, 4
      %s120 = int_to_ptr.hbm [resolvable:$true] %s119
      %125 = dma.vmem_to_hbm [thread:$0]  %s118, 256, %s120, [#allocation4], 128, 128, 8
    $region33: #{tpu_custom_call.1} parent=1 // pred_fallthru
      _
    // Predicated region
    $region34: #{tpu_custom_call.1} parent=1 // pred_check
      _
    $region35: #{tpu_custom_call.1} parent=1 // pred_check_branch
      %127 = sbr.rel (0) target = $region37
    $region36: #{tpu_custom_call.1} parent=1 // pred_region
      %129 = dma.done [#allocation4], 256
    $region37: #{tpu_custom_call.1} parent=1 // pred_fallthru
      _
    %130 = vsyncpa [#allocation3], 1
    %131 = vsyncpa [#allocation6], 1
    %132 = vsyncpa [#allocation4], 1

</llo_original>
